<compile_context>
chip_gen: v6e
topology: v6e:2x2x1
jax: 0.10.0
libtpu: 0.0.40
codegen_flags: <defaults>
</compile_context>

<pallas_src>
import jax
import jax.numpy as jnp
from jax.experimental import pallas as pl
from jax.experimental.pallas import tpu as pltpu

REAL_DIM = 5
CAT_DIMS = [16]
EMB_DIM = 5
HID_DIM = 32
OUT_DIM = 16
CAT_DIM = len(CAT_DIMS) * EMB_DIM          # 5
INPUT_DIM = REAL_DIM + CAT_DIM             # 10

_NODE_TILE = 512                           # bf16 adj tile: 512x512 = 0.5 MiB


def _round_up(x, m):
    return ((x + m - 1) // m) * m


def _choose_tiles(n):
    """Return (n_pad, node_tile).  Blocks obey the (8,128)/full-dim rule."""
    if n <= _NODE_TILE:
        n_pad = max(8, _round_up(n, 8))
        return n_pad, n_pad                # single tile == full array dims
    n_pad = _round_up(n, _NODE_TILE)
    return n_pad, _NODE_TILE


# --------------------------------------------------------------------------
# Kernel 1: per-node MLPs.  All tensors are (features, node_tile).
#   hid = ReLU(W_hid @ x + b_hid)                       (16, T)
#   msg = ReLU(W_m2 @ ReLU(W_m1 @ hid + b_m1) + b_m2)   (16, T), cast to bf16
# --------------------------------------------------------------------------
def node_mlp_kernel(feat_ref, w_hid_ref, b_hid_ref, w_m1_ref, b_m1_ref,
                    w_m2_ref, b_m2_ref, hid_ref, msg_ref):
    x = feat_ref[...]                                            # (10, T) f32
    hid = jnp.maximum(
        jnp.dot(w_hid_ref[...], x, preferred_element_type=jnp.float32)
        + b_hid_ref[...], 0.0)                                   # (16, T)
    m = jnp.maximum(
        jnp.dot(w_m1_ref[...], hid, preferred_element_type=jnp.float32)
        + b_m1_ref[...], 0.0)                                    # (32, T)
    msg = jnp.maximum(
        jnp.dot(w_m2_ref[...], m, preferred_element_type=jnp.float32)
        + b_m2_ref[...], 0.0)                                    # (16, T)
    hid_ref[...] = hid
    msg_ref[...] = msg.astype(msg_ref.dtype)                     # bf16 for A@msg


# --------------------------------------------------------------------------
# Kernel 2: graph aggregation + agg_linears + residual.
#   grid = (dst_tiles, src_tiles); src axis is the reduction axis.
#   f^T[:, dst] = sum_src  msg^T[:, src] @ A^T[src, dst]
#   out = ReLU(W_a2 @ ReLU(W_a1 @ f + b_a1) + b_a2) + hid
# --------------------------------------------------------------------------
def aggregate_kernel(msg_ref, adjT_ref, hid_ref,
                     w_a1_ref, b_a1_ref, w_a2_ref, b_a2_ref,
                     out_ref, f_acc):
    j = pl.program_id(1)

    @pl.when(j == 0)
    def _():
        f_acc[...] = jnp.zeros_like(f_acc)

    # bf16 x bf16 -> f32 accumulate on the MXU (A entries are exactly 0/1).
    f_acc[...] += jnp.dot(msg_ref[...], adjT_ref[...],
                          preferred_element_type=jnp.float32)

    @pl.when(j == pl.num_programs(1) - 1)
    def _():
        f = f_acc[...]                                           # (16, Td) f32
        a = jnp.maximum(
            jnp.dot(w_a1_ref[...], f, preferred_element_type=jnp.float32)
            + b_a1_ref[...], 0.0)                                # (32, Td)
        agg = jnp.maximum(
            jnp.dot(w_a2_ref[...], a, preferred_element_type=jnp.float32)
            + b_a2_ref[...], 0.0)                                # (16, Td)
        out_ref[...] = agg + hid_ref[...]


# --------------------------------------------------------------------------
# Parameters (PyTorch-native layout: weight = (out, in), bias = (out, 1)).
# --------------------------------------------------------------------------
def init_params(key):
    ks = jax.random.split(key, 11)

    def lin(k, fin, fout):
        kw, kb = jax.random.split(k)
        scale = 1.0 / jnp.sqrt(fin)
        w = jax.random.uniform(kw, (fout, fin), jnp.float32, -scale, scale)
        b = jax.random.uniform(kb, (fout, 1), jnp.float32, -scale, scale)
        return w, b

    params = {}
    params["w_hid"], params["b_hid"] = lin(ks[0], INPUT_DIM, OUT_DIM)   # (16,10)
    params["w_m1"], params["b_m1"] = lin(ks[1], OUT_DIM, HID_DIM)       # (32,16)
    params["w_m2"], params["b_m2"] = lin(ks[2], HID_DIM, OUT_DIM)       # (16,32)
    params["w_a1"], params["b_a1"] = lin(ks[3], OUT_DIM, HID_DIM)       # (32,16)
    params["w_a2"], params["b_a2"] = lin(ks[4], HID_DIM, OUT_DIM)       # (16,32)
    params["emb_tables"] = [
        jax.random.normal(ks[5 + i], (d, EMB_DIM), jnp.float32)
        for i, d in enumerate(CAT_DIMS)
    ]
    return params


# --------------------------------------------------------------------------
# Forward wrapper.
# --------------------------------------------------------------------------
def gcn_forward(adj, real_features, cat_features, params):
    n = real_features.shape[0]

    # Global abs-max normalization (hoisted: it is a reduction over ALL nodes,
    # so it must not live inside a node-tiled kernel).
    maxabs = jnp.max(jnp.abs(real_features), axis=0, keepdims=True)
    real_n = real_features / (maxabs + 1e-12)

    # Embedding lookup (tiny gather, kept in plain JAX).
    # TODO(synk): a CSR/neighbor-list gather-sum via PrefetchScalarGridSpec
    # would replace the dense A@msg for truly sparse graphs; dense bf16 A here.
    cat_embs = jnp.zeros((n, CAT_DIM), jnp.float32)
    for i in range(len(CAT_DIMS)):
        st, end = i * CAT_DIM, (i + 1) * CAT_DIM
        cat_embs = cat_embs.at[:, st:end].add(
            params["emb_tables"][i][cat_features[:, i]])

    features = jnp.concatenate([real_n, cat_embs], axis=-1)      # (n, 10)

    n_pad, tile_n = _choose_tiles(n)
    n_tiles = n_pad // tile_n

    # Node-on-lane layout; zero-pad extra node columns (padded src columns of
    # A^T are zero so padded nodes never leak into real outputs).
    feat_T = jnp.zeros((INPUT_DIM, n_pad), jnp.float32).at[:, :n].set(features.T)
    adj_T = (jnp.zeros((n_pad, n_pad), jnp.float32)
             .at[:n, :n].set(adj.T)).astype(jnp.bfloat16)        # A^T[src, dst]

    # ---- kernel 1: per-node MLPs (hid, msg) ----
    hid_T, msg_T = pl.pallas_call(
        node_mlp_kernel,
        out_shape=(jax.ShapeDtypeStruct((OUT_DIM, n_pad), jnp.float32),
                   jax.ShapeDtypeStruct((OUT_DIM, n_pad), jnp.bfloat16)),
        grid=(n_tiles,),
        in_specs=[
            pl.BlockSpec((INPUT_DIM, tile_n), lambda i: (0, i)),
            pl.BlockSpec((OUT_DIM, INPUT_DIM), lambda i: (0, 0)),
            pl.BlockSpec((OUT_DIM, 1), lambda i: (0, 0)),
            pl.BlockSpec((HID_DIM, OUT_DIM), lambda i: (0, 0)),
            pl.BlockSpec((HID_DIM, 1), lambda i: (0, 0)),
            pl.BlockSpec((OUT_DIM, HID_DIM), lambda i: (0, 0)),
            pl.BlockSpec((OUT_DIM, 1), lambda i: (0, 0)),
        ],
        out_specs=(pl.BlockSpec((OUT_DIM, tile_n), lambda i: (0, i)),
                   pl.BlockSpec((OUT_DIM, tile_n), lambda i: (0, i))),
        compiler_params=pltpu.CompilerParams(
            dimension_semantics=("parallel",)),
    )(feat_T, params["w_hid"], params["b_hid"],
      params["w_m1"], params["b_m1"], params["w_m2"], params["b_m2"])

    # ---- kernel 2: aggregation (dst-parallel, src-reduction) + agg MLP ----
    out_T = pl.pallas_call(
        aggregate_kernel,
        out_shape=jax.ShapeDtypeStruct((OUT_DIM, n_pad), jnp.float32),
        grid=(n_tiles, n_tiles),
        in_specs=[
            pl.BlockSpec((OUT_DIM, tile_n), lambda i, j: (0, j)),   # msg^T
            pl.BlockSpec((tile_n, tile_n), lambda i, j: (j, i)),    # A^T tile
            pl.BlockSpec((OUT_DIM, tile_n), lambda i, j: (0, i)),   # hid^T
            pl.BlockSpec((HID_DIM, OUT_DIM), lambda i, j: (0, 0)),
            pl.BlockSpec((HID_DIM, 1), lambda i, j: (0, 0)),
            pl.BlockSpec((OUT_DIM, HID_DIM), lambda i, j: (0, 0)),
            pl.BlockSpec((OUT_DIM, 1), lambda i, j: (0, 0)),
        ],
        out_specs=pl.BlockSpec((OUT_DIM, tile_n), lambda i, j: (0, i)),
        scratch_shapes=[pltpu.VMEM((OUT_DIM, tile_n), jnp.float32)],
        compiler_params=pltpu.CompilerParams(
            dimension_semantics=("parallel", "arbitrary")),
    )(msg_T, adj_T, hid_T,
      params["w_a1"], params["b_a1"], params["w_a2"], params["b_a2"])

    return out_T[:, :n].T                                        # (n, 16)


# --------------------------------------------------------------------------
# Pure-JAX reference (matches the PyTorch module).
# --------------------------------------------------------------------------
def gcn_reference(adj, real_features, cat_features, params):
    n = real_features.shape[0]
    maxabs = jnp.max(jnp.abs(real_features), axis=0, keepdims=True)
    real_n = real_features / (maxabs + 1e-12)
    cat_embs = jnp.zeros((n, CAT_DIM), jnp.float32)
    for i in range(len(CAT_DIMS)):
        st, end = i * CAT_DIM, (i + 1) * CAT_DIM
        cat_embs = cat_embs.at[:, st:end].add(
            params["emb_tables"][i][cat_features[:, i]])
    x = jnp.concatenate([real_n, cat_embs], axis=-1)
    relu = lambda v: jnp.maximum(v, 0.0)
    hid = relu(x @ params["w_hid"].T + params["b_hid"].T)
    msg = relu(relu(hid @ params["w_m1"].T + params["b_m1"].T)
               @ params["w_m2"].T + params["b_m2"].T)
    f = adj @ msg
    agg = relu(relu(f @ params["w_a1"].T + params["b_a1"].T)
               @ params["w_a2"].T + params["b_a2"].T)
    return agg + hid


if __name__ == "__main__":
    key = jax.random.PRNGKey(0)
    k_param, k_real, k_cat = jax.random.split(key, 3)

    N = 8  # number of graph nodes
    params = init_params(k_param)

    real_features = jax.random.normal(k_real, (N, REAL_DIM), jnp.float32)
    cat_features = jax.random.randint(k_cat, (N, len(CAT_DIMS)), 0, CAT_DIMS[0])

    # Deterministic small graph: ring, edge i -> (i+1) % N.  A[dst, src] = 1.
    src = jnp.arange(N)
    dst = (src + 1) % N
    adj = jnp.zeros((N, N), jnp.float32).at[dst, src].set(1.0)

    out = gcn_forward(adj, real_features, cat_features, params)
    jax.block_until_ready(out)
    assert out.shape == (N, OUT_DIM)

    ref = gcn_reference(adj, real_features, cat_features, params)
    # msg is carried through the aggregation matmul in bf16 -> loose tolerance.
    assert jnp.allclose(out, ref, rtol=5e-2, atol=5e-2), \
        float(jnp.max(jnp.abs(out - ref)))
    print("KERNEL_OK")
</pallas_src>

<mosaic_0001>
module attributes {stable_mosaic.version = 11 : i64} {
  func.func @node_mlp_kernel(%arg0: i32, %arg1: memref<10x8xf32, #tpu.memory_space<vmem>>, %arg2: memref<16x10xf32, #tpu.memory_space<vmem>>, %arg3: memref<16x1xf32, #tpu.memory_space<vmem>>, %arg4: memref<32x16xf32, #tpu.memory_space<vmem>>, %arg5: memref<32x1xf32, #tpu.memory_space<vmem>>, %arg6: memref<16x32xf32, #tpu.memory_space<vmem>>, %arg7: memref<16x1xf32, #tpu.memory_space<vmem>>, %arg8: memref<16x8xf32, #tpu.memory_space<vmem>>, %arg9: memref<16x8xbf16, #tpu.memory_space<vmem>>) attributes {dimension_semantics = [#tpu.dimension_semantics<parallel>], iteration_bounds = array<i64: 1>, scalar_prefetch = 0 : i64, scratch_operands = 0 : i64, tpu.core_type = #tpu.core_type<tc>, window_params = [{transform_indices = @transform_0, window_bounds = array<i64: 10, 8>}, {pipeline_mode = #tpu.pipeline_mode<synchronous>, transform_indices = @transform_1, window_bounds = array<i64: 16, 10>}, {pipeline_mode = #tpu.pipeline_mode<synchronous>, transform_indices = @transform_2, window_bounds = array<i64: 16, 1>}, {pipeline_mode = #tpu.pipeline_mode<synchronous>, transform_indices = @transform_3, window_bounds = array<i64: 32, 16>}, {pipeline_mode = #tpu.pipeline_mode<synchronous>, transform_indices = @transform_4, window_bounds = array<i64: 32, 1>}, {pipeline_mode = #tpu.pipeline_mode<synchronous>, transform_indices = @transform_5, window_bounds = array<i64: 16, 32>}, {pipeline_mode = #tpu.pipeline_mode<synchronous>, transform_indices = @transform_6, window_bounds = array<i64: 16, 1>}, {transform_indices = @transform_7, window_bounds = array<i64: 16, 8>}, {transform_indices = @transform_8, window_bounds = array<i64: 16, 8>}]} {
    %c0 = arith.constant 0 : index
    %c0_0 = arith.constant 0 : index
    %0 = vector.load %arg1[%c0, %c0_0] : memref<10x8xf32, #tpu.memory_space<vmem>>, vector<10x8xf32>
    %c0_1 = arith.constant 0 : index
    %c0_2 = arith.constant 0 : index
    %1 = vector.load %arg2[%c0_1, %c0_2] : memref<16x10xf32, #tpu.memory_space<vmem>>, vector<16x10xf32>
    %cst = arith.constant dense<0.000000e+00> : vector<16x8xf32>
    %2 = tpu.matmul %1, %0, %cst {dimension_numbers = #tpu.dot_dimension_numbers<[1], [0], [0], [1], [0, 0, 1, 1], [], []>} : vector<16x10xf32>, vector<10x8xf32>, vector<16x8xf32> -> vector<16x8xf32>
    %c0_3 = arith.constant 0 : index
    %c0_4 = arith.constant 0 : index
    %3 = vector.load %arg3[%c0_3, %c0_4] : memref<16x1xf32, #tpu.memory_space<vmem>>, vector<16x1xf32>
    %4 = vector.broadcast %3 : vector<16x1xf32> to vector<16x8xf32>
    %5 = arith.addf %2, %4 : vector<16x8xf32>
    %cst_5 = arith.constant 0.000000e+00 : f32
    %6 = vector.broadcast %cst_5 : f32 to vector<16x8xf32>
    %7 = arith.maximumf %5, %6 : vector<16x8xf32>
    %c0_6 = arith.constant 0 : index
    %c0_7 = arith.constant 0 : index
    %8 = vector.load %arg4[%c0_6, %c0_7] : memref<32x16xf32, #tpu.memory_space<vmem>>, vector<32x16xf32>
    %cst_8 = arith.constant dense<0.000000e+00> : vector<32x8xf32>
    %9 = tpu.matmul %8, %7, %cst_8 {dimension_numbers = #tpu.dot_dimension_numbers<[1], [0], [0], [1], [0, 0, 1, 1], [], []>} : vector<32x16xf32>, vector<16x8xf32>, vector<32x8xf32> -> vector<32x8xf32>
    %c0_9 = arith.constant 0 : index
    %c0_10 = arith.constant 0 : index
    %10 = vector.load %arg5[%c0_9, %c0_10] : memref<32x1xf32, #tpu.memory_space<vmem>>, vector<32x1xf32>
    %11 = vector.broadcast %10 : vector<32x1xf32> to vector<32x8xf32>
    %12 = arith.addf %9, %11 : vector<32x8xf32>
    %cst_11 = arith.constant 0.000000e+00 : f32
    %13 = vector.broadcast %cst_11 : f32 to vector<32x8xf32>
    %14 = arith.maximumf %12, %13 : vector<32x8xf32>
    %c0_12 = arith.constant 0 : index
    %c0_13 = arith.constant 0 : index
    %15 = vector.load %arg6[%c0_12, %c0_13] : memref<16x32xf32, #tpu.memory_space<vmem>>, vector<16x32xf32>
    %cst_14 = arith.constant dense<0.000000e+00> : vector<16x8xf32>
    %16 = tpu.matmul %15, %14, %cst_14 {dimension_numbers = #tpu.dot_dimension_numbers<[1], [0], [0], [1], [0, 0, 1, 1], [], []>} : vector<16x32xf32>, vector<32x8xf32>, vector<16x8xf32> -> vector<16x8xf32>
    %c0_15 = arith.constant 0 : index
    %c0_16 = arith.constant 0 : index
    %17 = vector.load %arg7[%c0_15, %c0_16] : memref<16x1xf32, #tpu.memory_space<vmem>>, vector<16x1xf32>
    %18 = vector.broadcast %17 : vector<16x1xf32> to vector<16x8xf32>
    %19 = arith.addf %16, %18 : vector<16x8xf32>
    %cst_17 = arith.constant 0.000000e+00 : f32
    %20 = vector.broadcast %cst_17 : f32 to vector<16x8xf32>
    %21 = arith.maximumf %19, %20 : vector<16x8xf32>
    %c0_18 = arith.constant 0 : index
    %c0_19 = arith.constant 0 : index
    %22 = vector.load %arg8[%c0_18, %c0_19] : memref<16x8xf32, #tpu.memory_space<vmem>>, vector<16x8xf32>
    tpu.vector_store %arg8[%c0_18, %c0_19], %7 {strides = array<i32>} : memref<16x8xf32, #tpu.memory_space<vmem>>, vector<16x8xf32>,
    %23 = arith.truncf %21 : vector<16x8xf32> to vector<16x8xbf16>
    %c0_20 = arith.constant 0 : index
    %c0_21 = arith.constant 0 : index
    %24 = vector.load %arg9[%c0_20, %c0_21] : memref<16x8xbf16, #tpu.memory_space<vmem>>, vector<16x8xbf16>
    tpu.vector_store %arg9[%c0_20, %c0_21], %23 {strides = array<i32>} : memref<16x8xbf16, #tpu.memory_space<vmem>>, vector<16x8xbf16>,
    return
  }
  func.func @transform_0(%arg0: i32) -> (i32, i32) {
    %c0_i32 = arith.constant 0 : i32
    %c0_i32_0 = arith.constant 0 : i32
    return %c0_i32, %arg0 : i32, i32
  }
  func.func @transform_1(%arg0: i32) -> (i32, i32) {
    %c0_i32 = arith.constant 0 : i32
    %c0_i32_0 = arith.constant 0 : i32
    %c0_i32_1 = arith.constant 0 : i32
    return %c0_i32, %c0_i32_0 : i32, i32
  }
  func.func @transform_2(%arg0: i32) -> (i32, i32) {
    %c0_i32 = arith.constant 0 : i32
    %c0_i32_0 = arith.constant 0 : i32
    %c0_i32_1 = arith.constant 0 : i32
    return %c0_i32, %c0_i32_0 : i32, i32
  }
  func.func @transform_3(%arg0: i32) -> (i32, i32) {
    %c0_i32 = arith.constant 0 : i32
    %c0_i32_0 = arith.constant 0 : i32
    %c0_i32_1 = arith.constant 0 : i32
    return %c0_i32, %c0_i32_0 : i32, i32
  }
  func.func @transform_4(%arg0: i32) -> (i32, i32) {
    %c0_i32 = arith.constant 0 : i32
    %c0_i32_0 = arith.constant 0 : i32
    %c0_i32_1 = arith.constant 0 : i32
    return %c0_i32, %c0_i32_0 : i32, i32
  }
  func.func @transform_5(%arg0: i32) -> (i32, i32) {
    %c0_i32 = arith.constant 0 : i32
    %c0_i32_0 = arith.constant 0 : i32
    %c0_i32_1 = arith.constant 0 : i32
    return %c0_i32, %c0_i32_0 : i32, i32
  }
  func.func @transform_6(%arg0: i32) -> (i32, i32) {
    %c0_i32 = arith.constant 0 : i32
    %c0_i32_0 = arith.constant 0 : i32
    %c0_i32_1 = arith.constant 0 : i32
    return %c0_i32, %c0_i32_0 : i32, i32
  }
  func.func @transform_7(%arg0: i32) -> (i32, i32) {
    %c0_i32 = arith.constant 0 : i32
    %c0_i32_0 = arith.constant 0 : i32
    return %c0_i32, %arg0 : i32, i32
  }
  func.func @transform_8(%arg0: i32) -> (i32, i32) {
    %c0_i32 = arith.constant 0 : i32
    %c0_i32_0 = arith.constant 0 : i32
    return %c0_i32, %arg0 : i32, i32
  }
}

</mosaic_0001>

<llo_original>
// kernel: tpu_custom_call.1
$region0: #{tpu_custom_call.1}
  #allocation0 [shape = 'u32[]', space=smem, size = 0x4, offset = 0x4, fixed_abs, tag = 'smem constant byte address 0x4 - core index']
  #allocation1 [shape = 'u32[144,128]{1,0:T(1,128)}', space=vmem, size = 0x12000, scoped, tag = 'internal scratch']
  %s0 = inlined_call_operand.vmem [shape: f32[10,8], index: 0, kind: input, shape index: {}]
  %s1 = inlined_call_operand.vmem [shape: f32[16,10], index: 1, kind: input, shape index: {}]
  %s2 = inlined_call_operand.vmem [shape: f32[16,1], index: 2, kind: input, shape index: {}]
  %s3 = inlined_call_operand.vmem [shape: f32[32,16], index: 3, kind: input, shape index: {}]
  %s4 = inlined_call_operand.vmem [shape: f32[32,1], index: 4, kind: input, shape index: {}]
  %s5 = inlined_call_operand.vmem [shape: f32[16,32], index: 5, kind: input, shape index: {}]
  %s6 = inlined_call_operand.vmem [shape: f32[16,1], index: 6, kind: input, shape index: {}]
  %s7 = inlined_call_operand.vmem [shape: f32[16,8], index: 7, kind: output, shape index: {0}]
  %s8 = inlined_call_operand.vmem [shape: bf16[16,8], index: 8, kind: output, shape index: {1}]
  %9 = xla_tuple %s7, %s8
  %s10 = sld [smem:[#allocation0]]
  $region46: #{tpu_custom_call.1} parent=0
    _
  %s12 = ssub.s32 1, %s10
  %s13 = scalar_select 0, %s12, %s10
  // Predicated region
  $region2: #{tpu_custom_call.1} parent=0 // pred_check
    _
  $region3: #{tpu_custom_call.1} parent=0 // pred_check_branch
    %15 = sbr.rel (0) target = $region5
  $region4: #{tpu_custom_call.1} parent=0 // pred_region
    _
  $region5: #{tpu_custom_call.1} parent=0 // pred_fallthru
    _
  // Predicated region
  $region6: #{tpu_custom_call.1} parent=0 // pred_check
    _
  $region7: #{tpu_custom_call.1} parent=0 // pred_check_branch
    %17 = sbr.rel (0) target = $region9
  $region8: #{tpu_custom_call.1} parent=0 // pred_region
    _
  $region9: #{tpu_custom_call.1} parent=0 // pred_fallthru
    _
  // Predicated region
  $region10: #{tpu_custom_call.1} parent=0 // pred_check
    _
  $region11: #{tpu_custom_call.1} parent=0 // pred_check_branch
    %19 = sbr.rel (0) target = $region13
  $region12: #{tpu_custom_call.1} parent=0 // pred_region
    _
  $region13: #{tpu_custom_call.1} parent=0 // pred_fallthru
    _
  // Predicated region
  $region14: #{tpu_custom_call.1} parent=0 // pred_check
    _
  $region15: #{tpu_custom_call.1} parent=0 // pred_check_branch
    %21 = sbr.rel (0) target = $region17
  $region16: #{tpu_custom_call.1} parent=0 // pred_region
    _
  $region17: #{tpu_custom_call.1} parent=0 // pred_fallthru
    _
  // Predicated region
  $region18: #{tpu_custom_call.1} parent=0 // pred_check
    _
  $region19: #{tpu_custom_call.1} parent=0 // pred_check_branch
    %23 = sbr.rel (0) target = $region21
  $region20: #{tpu_custom_call.1} parent=0 // pred_region
    _
  $region21: #{tpu_custom_call.1} parent=0 // pred_fallthru
    _
  // Predicated region
  $region22: #{tpu_custom_call.1} parent=0 // pred_check
    _
  $region23: #{tpu_custom_call.1} parent=0 // pred_check_branch
    %25 = sbr.rel (0) target = $region25
  $region24: #{tpu_custom_call.1} parent=0 // pred_region
    _
  $region25: #{tpu_custom_call.1} parent=0 // pred_fallthru
    _
  // Predicated region
  $region26: #{tpu_custom_call.1} parent=0 // pred_check
    _
  $region27: #{tpu_custom_call.1} parent=0 // pred_check_branch
    %27 = sbr.rel (0) target = $region29
  $region28: #{tpu_custom_call.1} parent=0 // pred_region
    _
  $region29: #{tpu_custom_call.1} parent=0 // pred_fallthru
    _
  %v28 = vld [vmem:[%s0] sm:$0xff]
  %v29 = vld [vmem:[%s0 + $0x8] sm:$0x3]
  %v30 = vld [vmem:[%s1] sm:$0xff]
  %v31 = vld [vmem:[%s1 + $0x8] sm:$0xff]
  %v32 = vld [vmem:[%s2] sm:$0xff]
  %v33 = vld [vmem:[%s2 + $0x8] sm:$0xff]
  %35 = vset.pattern.permute.xlu0 0
  %36 = vperm.xlu0 %35, %v32
  %v37 = vpop.permute.xlu0 %36
  %40 = vset.pattern.permute.xlu0 0
  %41 = vperm.xlu0 %40, %v33
  %v42 = vpop.permute.xlu0 %41
  %vm44 = vcmask 80896
  %v46 = vsel %vm44, %v30, 0
  %v49 = vsel %vm44, %v31, 0
  %vm51 = vcmask 1041408
  %v53 = vsel %vm51, %v29, 0
  %55 = vmatprep.subr.mxu0 0.0
  %56 = vmatpush1.msra.mxu0 0.0
  %57 = vmatprep.subr.mxu0 0.0
  %58 = vmatpush1.msra.mxu0 0.0
  %59 = vmatprep.subr.mxu0 0.0
  %60 = vmatpush1.msra.mxu0 0.0
  %61 = vmatprep.subr.mxu0 0.0
  %62 = vmatpush1.msra.mxu0 0.0
  %63 = vmatprep.subr.mxu0 0.0
  %64 = vmatpush1.msra.mxu0 0.0
  %65 = vmatprep.subr.mxu0 0.0
  %66 = vmatpush1.msra.mxu0 0.0
  %67 = vmatprep.subr.mxu0 0.0
  %68 = vmatpush1.msra.mxu0 0.0
  %69 = vmatprep.subr.mxu0 0.0
  %70 = vmatpush1.msra.mxu0 0.0
  %71 = vmatprep.subr.mxu0 0.0
  %72 = vmatpush1.msra.mxu0 0.0
  %73 = vmatprep.subr.mxu0 0.0
  %74 = vmatpush1.msra.mxu0 0.0
  %75 = vmatprep.subr.mxu0 0.0
  %76 = vmatpush1.msra.mxu0 0.0
  %77 = vmatprep.subr.mxu0 0.0
  %78 = vmatpush1.msra.mxu0 0.0
  %79 = vmatprep.subr.mxu0 0.0
  %80 = vmatpush1.msra.mxu0 0.0
  %81 = vmatprep.subr.mxu0 0.0
  %82 = vmatpush1.msra.mxu0 0.0
  %83 = vmatprep.subr.mxu0 0.0
  %84 = vmatpush1.msra.mxu0 %v53
  %85 = vmatprep.subr.mxu0 0.0
  %86 = vmatpush1.msra.mxu0 %v28
  %87 = vmatprep.subr.mxu0 0.0
  %88 = vmatpush2.msra.mxu0 0.0
  %89 = vmatprep.subr.mxu0 0.0
  %90 = vmatpush2.msra.mxu0 0.0
  %91 = vmatprep.subr.mxu0 0.0
  %92 = vmatpush2.msra.mxu0 0.0
  %93 = vmatprep.subr.mxu0 0.0
  %94 = vmatpush2.msra.mxu0 0.0
  %95 = vmatprep.subr.mxu0 0.0
  %96 = vmatpush2.msra.mxu0 0.0
  %97 = vmatprep.subr.mxu0 0.0
  %98 = vmatpush2.msra.mxu0 0.0
  %99 = vmatprep.subr.mxu0 0.0
  %100 = vmatpush2.msra.mxu0 0.0
  %101 = vmatprep.subr.mxu0 0.0
  %102 = vmatpush2.msra.mxu0 0.0
  %103 = vmatprep.subr.mxu0 0.0
  %104 = vmatpush2.msra.mxu0 0.0
  %105 = vmatprep.subr.mxu0 0.0
  %106 = vmatpush2.msra.mxu0 0.0
  %107 = vmatprep.subr.mxu0 0.0
  %108 = vmatpush2.msra.mxu0 0.0
  %109 = vmatprep.subr.mxu0 0.0
  %110 = vmatpush2.msra.mxu0 0.0
  %111 = vmatprep.subr.mxu0 0.0
  %112 = vmatpush2.msra.mxu0 0.0
  %113 = vmatprep.subr.mxu0 0.0
  %114 = vmatpush2.msra.mxu0 0.0
  %115 = vmatprep.subr.mxu0 0.0
  %116 = vmatpush2.msra.mxu0 0.0
  %117 = vmatprep.subr.mxu0 0.0
  %118 = vmatpush2.msra.mxu0 0.0
  %119 = vmatprep.mubr.f32.mxu0 0.0
  %120 = vmatmul.mubr.f32.gmra.mxu0 %v46
  %v121 = vpop.f32.mrf.mxu0
  %v122 = vadd.f32 %v37, %v121
  %v123 = vpop.f32.mrf.mxu0
  %124 = vmatprep.mubr.f32.mxu0 0.0
  %125 = vmatmul.mubr.f32.gmra.mxu0 %v49
  %v126 = vpop.f32.mrf.mxu0
  %v127 = vadd.f32 %v42, %v126
  %v128 = vpop.f32.mrf.mxu0
  %129 = vdwg.mxu0
  %v130 = vmax.f32 %v122, 0.0
  %v131 = vmax.f32 %v127, 0.0
  %v132 = vld [vmem:[%s3] sm:$0xff]
  %v133 = vld [vmem:[%s3 + $0x8] sm:$0xff]
  %v134 = vld [vmem:[%s3 + $0x10] sm:$0xff]
  %v135 = vld [vmem:[%s3 + $0x18] sm:$0xff]
  %v136 = vld [vmem:[%s4] sm:$0xff]
  %v137 = vld [vmem:[%s4 + $0x8] sm:$0xff]
  %v138 = vld [vmem:[%s4 + $0x10] sm:$0xff]
  %v139 = vld [vmem:[%s4 + $0x18] sm:$0xff]
  %141 = vset.pattern.permute.xlu0 0
  %142 = vperm.xlu0 %141, %v136
  %v143 = vpop.permute.xlu0 %142
  %146 = vset.pattern.permute.xlu0 0
  %147 = vperm.xlu0 %146, %v137
  %v148 = vpop.permute.xlu0 %147
  %151 = vset.pattern.permute.xlu0 0
  %152 = vperm.xlu0 %151, %v138
  %v153 = vpop.permute.xlu0 %152
  %156 = vset.pattern.permute.xlu0 0
  %157 = vperm.xlu0 %156, %v139
  %v158 = vpop.permute.xlu0 %157
  %vm160 = vcmask 130048
  %v162 = vsel %vm160, %v132, 0
  %v165 = vsel %vm160, %v133, 0
  %v168 = vsel %vm160, %v134, 0
  %v171 = vsel %vm160, %v135, 0
  %173 = vmatprep.subr.mxu0 0.0
  %174 = vmatpush1.msra.mxu0 0.0
  %175 = vmatprep.subr.mxu0 0.0
  %176 = vmatpush1.msra.mxu0 0.0
  %177 = vmatprep.subr.mxu0 0.0
  %178 = vmatpush1.msra.mxu0 0.0
  %179 = vmatprep.subr.mxu0 0.0
  %180 = vmatpush1.msra.mxu0 0.0
  %181 = vmatprep.subr.mxu0 0.0
  %182 = vmatpush1.msra.mxu0 0.0
  %183 = vmatprep.subr.mxu0 0.0
  %184 = vmatpush1.msra.mxu0 0.0
  %185 = vmatprep.subr.mxu0 0.0
  %186 = vmatpush1.msra.mxu0 0.0
  %187 = vmatprep.subr.mxu0 0.0
  %188 = vmatpush1.msra.mxu0 0.0
  %189 = vmatprep.subr.mxu0 0.0
  %190 = vmatpush1.msra.mxu0 0.0
  %191 = vmatprep.subr.mxu0 0.0
  %192 = vmatpush1.msra.mxu0 0.0
  %193 = vmatprep.subr.mxu0 0.0
  %194 = vmatpush1.msra.mxu0 0.0
  %195 = vmatprep.subr.mxu0 0.0
  %196 = vmatpush1.msra.mxu0 0.0
  %197 = vmatprep.subr.mxu0 0.0
  %198 = vmatpush1.msra.mxu0 0.0
  %199 = vmatprep.subr.mxu0 0.0
  %200 = vmatpush1.msra.mxu0 0.0
  %201 = vmatprep.subr.mxu0 0.0
  %202 = vmatpush1.msra.mxu0 %v131
  %203 = vmatprep.subr.mxu0 0.0
  %204 = vmatpush1.msra.mxu0 %v130
  %205 = vmatprep.subr.mxu0 0.0
  %206 = vmatpush2.msra.mxu0 0.0
  %207 = vmatprep.subr.mxu0 0.0
  %208 = vmatpush2.msra.mxu0 0.0
  %209 = vmatprep.subr.mxu0 0.0
  %210 = vmatpush2.msra.mxu0 0.0
  %211 = vmatprep.subr.mxu0 0.0
  %212 = vmatpush2.msra.mxu0 0.0
  %213 = vmatprep.subr.mxu0 0.0
  %214 = vmatpush2.msra.mxu0 0.0
  %215 = vmatprep.subr.mxu0 0.0
  %216 = vmatpush2.msra.mxu0 0.0
  %217 = vmatprep.subr.mxu0 0.0
  %218 = vmatpush2.msra.mxu0 0.0
  %219 = vmatprep.subr.mxu0 0.0
  %220 = vmatpush2.msra.mxu0 0.0
  %221 = vmatprep.subr.mxu0 0.0
  %222 = vmatpush2.msra.mxu0 0.0
  %223 = vmatprep.subr.mxu0 0.0
  %224 = vmatpush2.msra.mxu0 0.0
  %225 = vmatprep.subr.mxu0 0.0
  %226 = vmatpush2.msra.mxu0 0.0
  %227 = vmatprep.subr.mxu0 0.0
  %228 = vmatpush2.msra.mxu0 0.0
  %229 = vmatprep.subr.mxu0 0.0
  %230 = vmatpush2.msra.mxu0 0.0
  %231 = vmatprep.subr.mxu0 0.0
  %232 = vmatpush2.msra.mxu0 0.0
  %233 = vmatprep.subr.mxu0 0.0
  %234 = vmatpush2.msra.mxu0 0.0
  %235 = vmatprep.subr.mxu0 0.0
  %236 = vmatpush2.msra.mxu0 0.0
  %237 = vmatprep.mubr.f32.mxu0 0.0
  %238 = vmatmul.mubr.f32.gmra.mxu0 %v162
  %v239 = vpop.f32.mrf.mxu0
  %v240 = vadd.f32 %v143, %v239
  %v241 = vpop.f32.mrf.mxu0
  %242 = vmatprep.mubr.f32.mxu0 0.0
  %243 = vmatmul.mubr.f32.gmra.mxu0 %v165
  %v244 = vpop.f32.mrf.mxu0
  %v245 = vadd.f32 %v148, %v244
  %v246 = vpop.f32.mrf.mxu0
  %247 = vmatprep.mubr.f32.mxu0 0.0
  %248 = vmatmul.mubr.f32.gmra.mxu0 %v168
  %v249 = vpop.f32.mrf.mxu0
  %v250 = vadd.f32 %v153, %v249
  %v251 = vpop.f32.mrf.mxu0
  %252 = vmatprep.mubr.f32.mxu0 0.0
  %253 = vmatmul.mubr.f32.gmra.mxu0 %v171
  %v254 = vpop.f32.mrf.mxu0
  %v255 = vadd.f32 %v158, %v254
  %v256 = vpop.f32.mrf.mxu0
  %257 = vdwg.mxu0
  %v258 = vmax.f32 %v240, 0.0
  %v259 = vmax.f32 %v245, 0.0
  %v260 = vmax.f32 %v250, 0.0
  %v261 = vmax.f32 %v255, 0.0
  %v262 = vld [vmem:[%s5] sm:$0xff]
  %v263 = vld [vmem:[%s5 + $0x8] sm:$0xff]
  %v264 = vld [vmem:[%s6] sm:$0xff]
  %v265 = vld [vmem:[%s6 + $0x8] sm:$0xff]
  %267 = vset.pattern.permute.xlu0 0
  %268 = vperm.xlu0 %267, %v264
  %v269 = vpop.permute.xlu0 %268
  %272 = vset.pattern.permute.xlu0 0
  %273 = vperm.xlu0 %272, %v265
  %v274 = vpop.permute.xlu0 %273
  %vm276 = vcmask 261120
  %v278 = vsel %vm276, %v262, 0
  %v281 = vsel %vm276, %v263, 0
  %283 = vmatprep.subr.mxu0 0.0
  %284 = vmatpush1.msra.mxu0 0.0
  %285 = vmatprep.subr.mxu0 0.0
  %286 = vmatpush1.msra.mxu0 0.0
  %287 = vmatprep.subr.mxu0 0.0
  %288 = vmatpush1.msra.mxu0 0.0
  %289 = vmatprep.subr.mxu0 0.0
  %290 = vmatpush1.msra.mxu0 0.0
  %291 = vmatprep.subr.mxu0 0.0
  %292 = vmatpush1.msra.mxu0 0.0
  %293 = vmatprep.subr.mxu0 0.0
  %294 = vmatpush1.msra.mxu0 0.0
  %295 = vmatprep.subr.mxu0 0.0
  %296 = vmatpush1.msra.mxu0 0.0
  %297 = vmatprep.subr.mxu0 0.0
  %298 = vmatpush1.msra.mxu0 0.0
  %299 = vmatprep.subr.mxu0 0.0
  %300 = vmatpush1.msra.mxu0 0.0
  %301 = vmatprep.subr.mxu0 0.0
  %302 = vmatpush1.msra.mxu0 0.0
  %303 = vmatprep.subr.mxu0 0.0
  %304 = vmatpush1.msra.mxu0 0.0
  %305 = vmatprep.subr.mxu0 0.0
  %306 = vmatpush1.msra.mxu0 0.0
  %307 = vmatprep.subr.mxu0 0.0
  %308 = vmatpush1.msra.mxu0 %v261
  %309 = vmatprep.subr.mxu0 0.0
  %310 = vmatpush1.msra.mxu0 %v260
  %311 = vmatprep.subr.mxu0 0.0
  %312 = vmatpush1.msra.mxu0 %v259
  %313 = vmatprep.subr.mxu0 0.0
  %314 = vmatpush1.msra.mxu0 %v258
  %315 = vmatprep.subr.mxu0 0.0
  %316 = vmatpush2.msra.mxu0 0.0
  %317 = vmatprep.subr.mxu0 0.0
  %318 = vmatpush2.msra.mxu0 0.0
  %319 = vmatprep.subr.mxu0 0.0
  %320 = vmatpush2.msra.mxu0 0.0
  %321 = vmatprep.subr.mxu0 0.0
  %322 = vmatpush2.msra.mxu0 0.0
  %323 = vmatprep.subr.mxu0 0.0
  %324 = vmatpush2.msra.mxu0 0.0
  %325 = vmatprep.subr.mxu0 0.0
  %326 = vmatpush2.msra.mxu0 0.0
  %327 = vmatprep.subr.mxu0 0.0
  %328 = vmatpush2.msra.mxu0 0.0
  %329 = vmatprep.subr.mxu0 0.0
  %330 = vmatpush2.msra.mxu0 0.0
  %331 = vmatprep.subr.mxu0 0.0
  %332 = vmatpush2.msra.mxu0 0.0
  %333 = vmatprep.subr.mxu0 0.0
  %334 = vmatpush2.msra.mxu0 0.0
  %335 = vmatprep.subr.mxu0 0.0
  %336 = vmatpush2.msra.mxu0 0.0
  %337 = vmatprep.subr.mxu0 0.0
  %338 = vmatpush2.msra.mxu0 0.0
  %339 = vmatprep.subr.mxu0 0.0
  %340 = vmatpush2.msra.mxu0 0.0
  %341 = vmatprep.subr.mxu0 0.0
  %342 = vmatpush2.msra.mxu0 0.0
  %343 = vmatprep.subr.mxu0 0.0
  %344 = vmatpush2.msra.mxu0 0.0
  %345 = vmatprep.subr.mxu0 0.0
  %346 = vmatpush2.msra.mxu0 0.0
  %347 = vmatprep.mubr.f32.mxu0 0.0
  %348 = vmatmul.mubr.f32.gmra.mxu0 %v278
  %v349 = vpop.f32.mrf.mxu0
  %v350 = vadd.f32 %v269, %v349
  %v351 = vpop.f32.mrf.mxu0
  %352 = vmatprep.mubr.f32.mxu0 0.0
  %353 = vmatmul.mubr.f32.gmra.mxu0 %v281
  %v354 = vpop.f32.mrf.mxu0
  %v355 = vadd.f32 %v274, %v354
  %v356 = vpop.f32.mrf.mxu0
  %357 = vdwg.mxu0
  %v358 = vmax.f32 %v350, 0.0
  %v359 = vmax.f32 %v355, 0.0
  %vm360 = vcmask 64512
  %361 = vst.msk [vmem:[%s7] sm:$0xff] %vm360, %v130
  %362 = vst.msk [vmem:[%s7 + $0x8] sm:$0xff] %vm360, %v131
  %v363 = vpack.c.bf16 %v359, %v358
  %v365 = vunpack.c.l.b16 %v363
  %v366 = vunpack.c.h.b16 %v363
  %v367 = vpack.c.b16 %v365, %v365
  %v368 = vpack.c.b16 %v366, %v366
  %vm371 = vcmask 60416
  %372 = vst.msk [vmem:[%s8] sm:$0xf] %vm371, %v367
  %373 = vst.msk [vmem:[%s8 + $0x4] sm:$0xf] %vm371, %v368
  // Predicated region
  $region30: #{tpu_custom_call.1} parent=0 // pred_check
    _
  $region31: #{tpu_custom_call.1} parent=0 // pred_check_branch
    %375 = sbr.rel (0) target = $region33
  $region32: #{tpu_custom_call.1} parent=0 // pred_region
    _
  $region33: #{tpu_custom_call.1} parent=0 // pred_fallthru
    _
  // Predicated region
  $region34: #{tpu_custom_call.1} parent=0 // pred_check
    _
  $region35: #{tpu_custom_call.1} parent=0 // pred_check_branch
    %377 = sbr.rel (0) target = $region37
  $region36: #{tpu_custom_call.1} parent=0 // pred_region
    _
  $region37: #{tpu_custom_call.1} parent=0 // pred_fallthru
    _
  // Predicated region
  $region38: #{tpu_custom_call.1} parent=0 // pred_check
    _
  $region39: #{tpu_custom_call.1} parent=0 // pred_check_branch
    %379 = sbr.rel (0) target = $region41
  $region40: #{tpu_custom_call.1} parent=0 // pred_region
    _
  $region41: #{tpu_custom_call.1} parent=0 // pred_fallthru
    _
  // Predicated region
  $region42: #{tpu_custom_call.1} parent=0 // pred_check
    _
  $region43: #{tpu_custom_call.1} parent=0 // pred_check_branch
    %381 = sbr.rel (0) target = $region45
  $region44: #{tpu_custom_call.1} parent=0 // pred_region
    _
  $region45: #{tpu_custom_call.1} parent=0 // pred_fallthru
    _

</llo_original>
